<compile_context>
chip_gen: v6e
topology: v6e:2x2x1
jax: 0.10.0
libtpu: 0.0.40
codegen_flags: <defaults>
</compile_context>

<pallas_src>
import jax
import jax.numpy as jnp
from jax.experimental import pallas as pl
from jax.experimental.pallas import tpu as pltpu


# ----------------------------------------------------------------------------
# Kernels
# ----------------------------------------------------------------------------
def dense_relu_kernel_f32(x_ref, w_ref, b_ref, o_ref):
    """f32-output variant: accumulate directly into the resident output block.

    x_ref: (tm, tk)  activations tile (compute dtype)
    w_ref: (tk, tn)  pre-transposed weight tile (compute dtype)
    b_ref: (1, tn)   bias tile (f32)
    o_ref: (tm, tn)  f32 output tile, resident across the k grid axis
    """
    k = pl.program_id(2)

    @pl.when(k == 0)
    def _init():
        o_ref[...] = jnp.zeros_like(o_ref)

    o_ref[...] += jnp.dot(x_ref[...], w_ref[...],
                          preferred_element_type=jnp.float32)

    @pl.when(k == pl.num_programs(2) - 1)
    def _finalize():
        o_ref[...] = jnp.maximum(o_ref[...] + b_ref[...], 0.0)


def dense_relu_kernel_acc(x_ref, w_ref, b_ref, o_ref, acc_ref):
    """Generic variant (non-f32 output dtype): f32 VMEM scratch accumulator."""
    k = pl.program_id(2)

    @pl.when(k == 0)
    def _init():
        acc_ref[...] = jnp.zeros_like(acc_ref)

    acc_ref[...] += jnp.dot(x_ref[...], w_ref[...],
                            preferred_element_type=jnp.float32)

    @pl.when(k == pl.num_programs(2) - 1)
    def _finalize():
        out = acc_ref[...] + b_ref[...].astype(jnp.float32)
        o_ref[...] = jnp.maximum(out, 0.0).astype(o_ref.dtype)


# ----------------------------------------------------------------------------
# Planning / parameter preparation (done once, outside the hot path)
# ----------------------------------------------------------------------------
def _round_up(x, m):
    return ((x + m - 1) // m) * m


def _vmem_budget_bytes():
    """~70% of physical VMEM (v5e/v6e: 128 MiB, v7x: 64 MiB)."""
    try:
        cap = pltpu.get_tpu_info().vmem_capacity_bytes
    except Exception:
        cap = 64 << 20  # conservative fallback (v7x-sized)
    return int(cap * 0.70)


def _lane_tile(dim, max_tile):
    """Lane-dim tile: full (128-aligned) dim if it fits, else max_tile.

    max_tile defaults are multiples of 256 so big problems stay aligned to the
    256-wide MXU on v6e/v7x; small dims only get padded to the 128-lane minimum.
    """
    aligned = _round_up(dim, 128)
    return aligned if aligned <= max_tile else max_tile


def make_plan(batch, in_features, out_features, *,
              compute_dtype=jnp.float32, out_dtype=jnp.float32,
              tm=512, tn=512, tk=1024):
    """Choose tile sizes / padded dims / VMEM limit for one Dense problem."""
    compute_dtype = jnp.dtype(compute_dtype)
    out_dtype = jnp.dtype(out_dtype)

    tm = min(tm, _round_up(batch, 8))
    tn = _lane_tile(out_features, tn)
    tk = _lane_tile(in_features, tk)

    in_isz = compute_dtype.itemsize
    out_isz = out_dtype.itemsize
    budget = _vmem_budget_bytes()

    def working_set(tm_, tn_, tk_):
        ws = 2 * (tm_ * tk_ + tk_ * tn_) * in_isz   # double-buffered x & W tiles
        ws += 2 * tm_ * tn_ * out_isz               # output block (double-buffered)
        ws += 2 * tn_ * 4                           # bias tile (f32)
        if out_dtype != jnp.float32:
            ws += tm_ * tn_ * 4                     # f32 accumulator scratch
        return ws

    # Shrink K first, then N, then M until the working set fits the budget
    # (matters on v7x's 64 MiB VMEM; defaults already fit comfortably).
    while working_set(tm, tn, tk) > budget and tk > 256:
        tk = max(256, tk // 2)
    while working_set(tm, tn, tk) > budget and tn > 256:
        tn = max(256, tn // 2)
    while working_set(tm, tn, tk) > budget and tm > 8:
        tm = max(8, tm // 2)

    batch_p = _round_up(batch, tm)
    in_p = _round_up(in_features, tk)
    out_p = _round_up(out_features, tn)
    vmem_limit = int(min(budget, max(32 << 20, 2 * working_set(tm, tn, tk))))

    return dict(tm=tm, tn=tn, tk=tk,
                batch_p=batch_p, in_p=in_p, out_p=out_p,
                vmem_limit=vmem_limit,
                compute_dtype=compute_dtype, out_dtype=out_dtype)


def prepare_dense_params(weight, bias, plan):
    """One-time weight/bias prep, hoisted out of the forward path.

    Transposes the PyTorch-layout (out, in) weight to (in, out) so the kernel
    is a plain K-contraction (no per-tile transpose), pads it to the tile grid
    so forward never re-pads the weight, and casts to the compute dtype.
    """
    out_f, in_f = weight.shape
    in_p, out_p = plan["in_p"], plan["out_p"]

    w_t = weight.T  # (in_f, out_f)
    if (in_p, out_p) != (in_f, out_f):
        w_t = jnp.pad(w_t, ((0, in_p - in_f), (0, out_p - out_f)))
    w_t = w_t.astype(plan["compute_dtype"])

    b = bias if out_p == out_f else jnp.pad(bias, (0, out_p - out_f))
    b = b.reshape(1, out_p).astype(jnp.float32)
    return w_t, b


# ----------------------------------------------------------------------------
# Forward
# ----------------------------------------------------------------------------
def dense_forward(x, w_prepared, b_prepared, plan, out_features):
    """x: (B, in_features); w_prepared: (in_p, out_p); b_prepared: (1, out_p).
    Returns ReLU(x @ W^T + b) with shape (B, out_features)."""
    batch, in_f = x.shape
    tm, tn, tk = plan["tm"], plan["tn"], plan["tk"]
    batch_p, in_p, out_p = plan["batch_p"], plan["in_p"], plan["out_p"]
    compute_dtype, out_dtype = plan["compute_dtype"], plan["out_dtype"]
    assert w_prepared.shape == (in_p, out_p)
    assert b_prepared.shape == (1, out_p)

    x_p = x.astype(compute_dtype)
    if (batch_p, in_p) != (batch, in_f):
        # Zero-padding along K is exact; padded rows are sliced off below.
        x_p = jnp.pad(x_p, ((0, batch_p - batch), (0, in_p - in_f)))

    grid = (batch_p // tm, out_p // tn, in_p // tk)
    n_i, n_j, _ = grid

    in_isz = compute_dtype.itemsize
    out_isz = out_dtype.itemsize
    # Actual HBM traffic including re-reads: x is streamed once per j-tile,
    # W once per i-tile.
    bytes_accessed = (batch_p * in_p * in_isz * n_j
                      + in_p * out_p * in_isz * n_i
                      + out_p * 4
                      + batch_p * out_p * out_isz)
    cost = pl.CostEstimate(flops=2 * batch_p * in_p * out_p,
                           bytes_accessed=int(bytes_accessed),
                           transcendentals=0)

    in_specs = [
        pl.BlockSpec((tm, tk), lambda i, j, k: (i, k)),   # x tile
        pl.BlockSpec((tk, tn), lambda i, j, k: (k, j)),   # W tile (pre-transposed)
        pl.BlockSpec((1, tn), lambda i, j, k: (0, j)),    # bias tile
    ]
    out_spec = pl.BlockSpec((tm, tn), lambda i, j, k: (i, j))

    if out_dtype == jnp.float32:
        kernel = dense_relu_kernel_f32          # accumulate directly into o_ref
        scratch_shapes = []
    else:
        kernel = dense_relu_kernel_acc          # f32 scratch accumulator
        scratch_shapes = [pltpu.VMEM((tm, tn), jnp.float32)]

    out_padded = pl.pallas_call(
        kernel,
        out_shape=jax.ShapeDtypeStruct((batch_p, out_p), out_dtype),
        grid_spec=pltpu.PrefetchScalarGridSpec(
            num_scalar_prefetch=0,
            grid=grid,
            in_specs=in_specs,
            out_specs=out_spec,
            scratch_shapes=scratch_shapes,
        ),
        compiler_params=pltpu.CompilerParams(
            # NOTE: k (reduction) must stay innermost and "arbitrary" — the
            # accumulator pattern depends on it.
            dimension_semantics=("parallel", "parallel", "arbitrary"),
            vmem_limit_bytes=plan["vmem_limit"],
        ),
        cost_estimate=cost,
    )(x_p, w_prepared, b_prepared)

    return out_padded[:batch, :out_features]


# ----------------------------------------------------------------------------
# Parameter init (matches the PyTorch module)
# ----------------------------------------------------------------------------
def init_dense_params(key, in_features, out_features, dtype=jnp.float32):
    """weight ~ kaiming_normal_ (fan_in, gain=sqrt(2)); bias ~ nn.Linear default
    U(-1/sqrt(fan_in), 1/sqrt(fan_in))."""
    kw, kb = jax.random.split(key)
    std = (2.0 / in_features) ** 0.5
    weight = std * jax.random.normal(kw, (out_features, in_features), dtype=dtype)
    bound = 1.0 / (in_features ** 0.5)
    bias = jax.random.uniform(kb, (out_features,), dtype=dtype,
                              minval=-bound, maxval=bound)
    return weight, bias


if __name__ == "__main__":
    key = jax.random.PRNGKey(0)
    k_x, k_p, k_x2, k_p2 = jax.random.split(key, 4)

    # Case 1: tiny shapes (exercise the padding path, single-tile grid).
    batch, in_f, out_f = 8, 32, 64
    x = jax.random.normal(k_x, (batch, in_f), dtype=jnp.float32)
    weight, bias = init_dense_params(k_p, in_f, out_f)
    plan = make_plan(batch, in_f, out_f)
    w_prep, b_prep = prepare_dense_params(weight, bias, plan)
    out = jax.block_until_ready(dense_forward(x, w_prep, b_prep, plan, out_f))
    ref = jnp.maximum(x @ weight.T + bias, 0.0)
    assert out.shape == (batch, out_f)
    assert jnp.allclose(out, ref, atol=1e-5, rtol=1e-5)

    # Case 2: ragged shapes with the default (large-tile) plan.
    batch2, in2, out2 = 300, 384, 256
    x2 = jax.random.normal(k_x2, (batch2, in2), dtype=jnp.float32)
    w2, b2 = init_dense_params(k_p2, in2, out2)
    plan2 = make_plan(batch2, in2, out2)
    w2_prep, b2_prep = prepare_dense_params(w2, b2, plan2)
    out2_arr = jax.block_until_ready(dense_forward(x2, w2_prep, b2_prep, plan2, out2))
    ref2 = jnp.maximum(x2 @ w2.T + b2, 0.0)
    assert out2_arr.shape == (batch2, out2)
    assert jnp.allclose(out2_arr, ref2, atol=1e-4, rtol=1e-4)

    # Case 3: forced small tiles -> multi-tile (i, j, k) grid, exercises the
    # k-axis accumulation into the resident output block.
    plan3 = make_plan(batch2, in2, out2, tm=128, tn=128, tk=128)
    w3_prep, b3_prep = prepare_dense_params(w2, b2, plan3)
    out3_arr = jax.block_until_ready(dense_forward(x2, w3_prep, b3_prep, plan3, out2))
    assert jnp.allclose(out3_arr, ref2, atol=1e-4, rtol=1e-4)

    # Case 4: optional bf16 compute + bf16 output (scratch-accumulator kernel).
    plan4 = make_plan(batch2, in2, out2,
                      compute_dtype=jnp.bfloat16, out_dtype=jnp.bfloat16)
    w4_prep, b4_prep = prepare_dense_params(w2, b2, plan4)
    out4_arr = jax.block_until_ready(dense_forward(x2, w4_prep, b4_prep, plan4, out2))
    assert out4_arr.shape == (batch2, out2)
    assert jnp.allclose(out4_arr.astype(jnp.float32), ref2, atol=0.1, rtol=0.1)

    print("KERNEL_OK")
</pallas_src>

<mosaic_0001>
module attributes {stable_mosaic.version = 11 : i64} {
  func.func @dense_relu_kernel_f32(%arg0: i32, %arg1: i32, %arg2: i32, %arg3: memref<8x128xf32, #tpu.memory_space<vmem>>, %arg4: memref<128x128xf32, #tpu.memory_space<vmem>>, %arg5: memref<1x128xf32, #tpu.memory_space<vmem>>, %arg6: memref<8x128xf32, #tpu.memory_space<vmem>>) attributes {dimension_semantics = [#tpu.dimension_semantics<parallel>, #tpu.dimension_semantics<parallel>, #tpu.dimension_semantics<arbitrary>], iteration_bounds = array<i64: 1, 1, 1>, scalar_prefetch = 0 : i64, scratch_operands = 0 : i64, tpu.core_type = #tpu.core_type<tc>, window_params = [{transform_indices = @transform_0, window_bounds = array<i64: 8, 128>}, {transform_indices = @transform_1, window_bounds = array<i64: 128, 128>}, {transform_indices = @transform_2, window_bounds = array<i64: 1, 128>}, {transform_indices = @transform_3, window_bounds = array<i64: 8, 128>}]} {
    %c0_i32 = arith.constant 0 : i32
    %0 = arith.cmpi eq, %arg2, %c0_i32 : i32
    %1 = arith.extui %0 : i1 to i32
    %c0_i32_0 = arith.constant 0 : i32
    %2 = arith.cmpi ne, %1, %c0_i32_0 : i32
    scf.if %2 {
      %cst_10 = arith.constant 0.000000e+00 : f32
      %12 = vector.broadcast %cst_10 : f32 to vector<8x128xf32>
      %c0_11 = arith.constant 0 : index
      %c0_12 = arith.constant 0 : index
      %13 = vector.load %arg6[%c0_11, %c0_12] : memref<8x128xf32, #tpu.memory_space<vmem>>, vector<8x128xf32>
      tpu.vector_store %arg6[%c0_11, %c0_12], %12 {strides = array<i32>} : memref<8x128xf32, #tpu.memory_space<vmem>>, vector<8x128xf32>,
    } else {
    }
    %c0 = arith.constant 0 : index
    %c0_1 = arith.constant 0 : index
    %3 = vector.load %arg6[%c0, %c0_1] : memref<8x128xf32, #tpu.memory_space<vmem>>, vector<8x128xf32>
    %c0_2 = arith.constant 0 : index
    %c0_3 = arith.constant 0 : index
    %4 = vector.load %arg3[%c0_2, %c0_3] : memref<8x128xf32, #tpu.memory_space<vmem>>, vector<8x128xf32>
    %c0_4 = arith.constant 0 : index
    %c0_5 = arith.constant 0 : index
    %5 = vector.load %arg4[%c0_4, %c0_5] : memref<128x128xf32, #tpu.memory_space<vmem>>, vector<128x128xf32>
    %cst = arith.constant dense<0.000000e+00> : vector<8x128xf32>
    %6 = tpu.matmul %4, %5, %cst {dimension_numbers = #tpu.dot_dimension_numbers<[1], [0], [0], [1], [0, 0, 1, 1], [], []>} : vector<8x128xf32>, vector<128x128xf32>, vector<8x128xf32> -> vector<8x128xf32>
    %7 = arith.addf %3, %6 : vector<8x128xf32>
    %c0_6 = arith.constant 0 : index
    %c0_7 = arith.constant 0 : index
    %8 = vector.load %arg6[%c0_6, %c0_7] : memref<8x128xf32, #tpu.memory_space<vmem>>, vector<8x128xf32>
    tpu.vector_store %arg6[%c0_6, %c0_7], %7 {strides = array<i32>} : memref<8x128xf32, #tpu.memory_space<vmem>>, vector<8x128xf32>,
    %c0_i32_8 = arith.constant 0 : i32
    %9 = arith.cmpi eq, %arg2, %c0_i32_8 : i32
    %10 = arith.extui %9 : i1 to i32
    %c0_i32_9 = arith.constant 0 : i32
    %11 = arith.cmpi ne, %10, %c0_i32_9 : i32
    scf.if %11 {
      %c0_10 = arith.constant 0 : index
      %c0_11 = arith.constant 0 : index
      %12 = vector.load %arg6[%c0_10, %c0_11] : memref<8x128xf32, #tpu.memory_space<vmem>>, vector<8x128xf32>
      %c0_12 = arith.constant 0 : index
      %c0_13 = arith.constant 0 : index
      %13 = vector.load %arg5[%c0_12, %c0_13] : memref<1x128xf32, #tpu.memory_space<vmem>>, vector<1x128xf32>
      %14 = vector.broadcast %13 : vector<1x128xf32> to vector<8x128xf32>
      %15 = arith.addf %12, %14 : vector<8x128xf32>
      %cst_14 = arith.constant 0.000000e+00 : f32
      %16 = vector.broadcast %cst_14 : f32 to vector<8x128xf32>
      %17 = arith.maximumf %15, %16 : vector<8x128xf32>
      %c0_15 = arith.constant 0 : index
      %c0_16 = arith.constant 0 : index
      %18 = vector.load %arg6[%c0_15, %c0_16] : memref<8x128xf32, #tpu.memory_space<vmem>>, vector<8x128xf32>
      tpu.vector_store %arg6[%c0_15, %c0_16], %17 {strides = array<i32>} : memref<8x128xf32, #tpu.memory_space<vmem>>, vector<8x128xf32>,
    } else {
    }
    return
  }
  func.func @transform_0(%arg0: i32, %arg1: i32, %arg2: i32) -> (i32, i32) {
    %c0_i32 = arith.constant 0 : i32
    return %arg0, %arg2 : i32, i32
  }
  func.func @transform_1(%arg0: i32, %arg1: i32, %arg2: i32) -> (i32, i32) {
    %c0_i32 = arith.constant 0 : i32
    return %arg2, %arg1 : i32, i32
  }
  func.func @transform_2(%arg0: i32, %arg1: i32, %arg2: i32) -> (i32, i32) {
    %c0_i32 = arith.constant 0 : i32
    %c0_i32_0 = arith.constant 0 : i32
    return %c0_i32, %arg1 : i32, i32
  }
  func.func @transform_3(%arg0: i32, %arg1: i32, %arg2: i32) -> (i32, i32) {
    %c0_i32 = arith.constant 0 : i32
    return %arg0, %arg1 : i32, i32
  }
}

</mosaic_0001>

<llo_original>
// kernel: tpu_custom_call.1
$region0: #{tpu_custom_call.1}
  #allocation0 [shape = 'u32[]', space=smem, size = 0x4, offset = 0x4, fixed_abs, tag = 'smem constant byte address 0x4 - core index']
  #allocation1 [shape = 'u32[144,128]{1,0:T(1,128)}', space=vmem, size = 0x12000, scoped, tag = 'internal scratch']
  %s0 = inlined_call_operand.hbm [shape: f32[8,128], index: 0, kind: input, shape index: {}]
  %s1 = inlined_call_operand.hbm [shape: f32[128,128], index: 1, kind: input, shape index: {}]
  %s2 = inlined_call_operand.vmem [shape: f32[1,128], index: 2, kind: input, shape index: {}]
  %s3 = inlined_call_operand.hbm [shape: f32[8,128], index: 3, kind: output, shape index: {}]
  %s4 = sld [smem:[#allocation0]]
  $region38: #{tpu_custom_call.1} parent=0
    _
  %s6 = ssub.s32 1, %s4
  %s7 = scalar_select 0, %s6, %s4
  $region1: #{tpu_custom_call.1} parent=0
    #allocation2 [shape = 'u8[4096]{0}', space=vmem, size = 0x1000, scoped, tag = 'input window, operand 0, single buffered']
    #allocation3 [shape = 's32[1]{0}', space=sflag, size = 0x4, scoped, tag = 'scoped memory for tpu_custom_call.1']
    #allocation4 [shape = 's32[1]{0}', space=sflag, size = 0x4, scoped, tag = 'scoped memory for tpu_custom_call.1']
    #allocation5 [shape = 'u8[65536]{0}', space=vmem, size = 0x10000, scoped, tag = 'input window, operand 1, single buffered']
    #allocation6 [shape = 's32[1]{0}', space=sflag, size = 0x4, scoped, tag = 'scoped memory for tpu_custom_call.1']
    #allocation7 [shape = 'u8[4096]{0}', space=vmem, size = 0x1000, scoped, tag = 'output window, operand 0, single buffered']
    %8 = vsyncpa [#allocation3], 0
    %9 = vsyncpa [#allocation6], 0
    %10 = vsyncpa [#allocation4], 0
    // Predicated region
    $region2: #{tpu_custom_call.1} parent=1 // pred_check
      _
    $region3: #{tpu_custom_call.1} parent=1 // pred_check_branch
      %12 = sbr.rel (0) target = $region5
    $region4: #{tpu_custom_call.1} parent=1 // pred_region
      %s14 = ssub.s32 128, 128
      %15 = vsyncadd [#allocation3], %s14
      %s17 = sshll.u32 [#allocation2], 4
      %s18 = int_to_ptr.vmem [resolvable:$true] %s17
      %20 = dma.hbm_to_vmem [thread:$0]  %s0, 128, %s18, [#allocation3]
    $region5: #{tpu_custom_call.1} parent=1 // pred_fallthru
      _
    // Predicated region
    $region6: #{tpu_custom_call.1} parent=1 // pred_check
      _
    $region7: #{tpu_custom_call.1} parent=1 // pred_check_branch
      %22 = sbr.rel (0) target = $region9
    $region8: #{tpu_custom_call.1} parent=1 // pred_region
      %s24 = ssub.s32 2048, 2048
      %25 = vsyncadd [#allocation6], %s24
      %s26 = sshll.u32 [#allocation5], 4
      %s27 = int_to_ptr.vmem [resolvable:$true] %s26
      %32 = dma.hbm_to_vmem [thread:$0]  %s1, 2048, %s27, [#allocation6], 128, 128, 8
    $region9: #{tpu_custom_call.1} parent=1 // pred_fallthru
      _
    // Predicated region
    $region10: #{tpu_custom_call.1} parent=1 // pred_check
      _
    $region11: #{tpu_custom_call.1} parent=1 // pred_check_branch
      %34 = sbr.rel (0) target = $region13
    $region12: #{tpu_custom_call.1} parent=1 // pred_region
      _
    $region13: #{tpu_custom_call.1} parent=1 // pred_fallthru
      _
    // Predicated region
    $region14: #{tpu_custom_call.1} parent=1 // pred_check
      _
    $region15: #{tpu_custom_call.1} parent=1 // pred_check_branch
      %36 = sbr.rel (0) target = $region17
    $region16: #{tpu_custom_call.1} parent=1 // pred_region
      %37 = dma.done [#allocation3], 128
    $region17: #{tpu_custom_call.1} parent=1 // pred_fallthru
      _
    // Predicated region
    $region18: #{tpu_custom_call.1} parent=1 // pred_check
      _
    $region19: #{tpu_custom_call.1} parent=1 // pred_check_branch
      %39 = sbr.rel (0) target = $region21
    $region20: #{tpu_custom_call.1} parent=1 // pred_region
      %40 = dma.done [#allocation6], 2048
    $region21: #{tpu_custom_call.1} parent=1 // pred_fallthru
      _
    %p41 = scmp.eq.s32.totalorder 0, 0
    // Predicated region
    $region22: #{tpu_custom_call.1} parent=1 // pred_check
      %p42 = pneg %p41
    $region23: #{tpu_custom_call.1} parent=1 // pred_check_branch
      %44 = sbr.rel (%p42) target = $region25
    $region24: #{tpu_custom_call.1} parent=1 // pred_region
      %45 = vst [vmem:[#allocation7] sm:$0xff] 0.0
    $region25: #{tpu_custom_call.1} parent=1 // pred_fallthru
      _
    %v46 = vld [vmem:[#allocation7] sm:$0xff]
    %v47 = vld [vmem:[#allocation2] sm:$0xff]
    %v48 = vld [vmem:[#allocation5] sm:$0xff]
    %v49 = vld [vmem:[#allocation5 + $0x8] sm:$0xff]
    %v50 = vld [vmem:[#allocation5 + $0x10] sm:$0xff]
    %v51 = vld [vmem:[#allocation5 + $0x18] sm:$0xff]
    %v52 = vld [vmem:[#allocation5 + $0x20] sm:$0xff]
    %v53 = vld [vmem:[#allocation5 + $0x28] sm:$0xff]
    %v54 = vld [vmem:[#allocation5 + $0x30] sm:$0xff]
    %v55 = vld [vmem:[#allocation5 + $0x38] sm:$0xff]
    %v56 = vld [vmem:[#allocation5 + $0x40] sm:$0xff]
    %v57 = vld [vmem:[#allocation5 + $0x48] sm:$0xff]
    %v58 = vld [vmem:[#allocation5 + $0x50] sm:$0xff]
    %v59 = vld [vmem:[#allocation5 + $0x58] sm:$0xff]
    %v60 = vld [vmem:[#allocation5 + $0x60] sm:$0xff]
    %v61 = vld [vmem:[#allocation5 + $0x68] sm:$0xff]
    %v62 = vld [vmem:[#allocation5 + $0x70] sm:$0xff]
    %v63 = vld [vmem:[#allocation5 + $0x78] sm:$0xff]
    %64 = vmatprep.subr.mxu0 0.0
    %65 = vmatpush1.msra.mxu0 %v63
    %66 = vmatprep.subr.mxu0 0.0
    %67 = vmatpush1.msra.mxu0 %v62
    %68 = vmatprep.subr.mxu0 0.0
    %69 = vmatpush1.msra.mxu0 %v61
    %70 = vmatprep.subr.mxu0 0.0
    %71 = vmatpush1.msra.mxu0 %v60
    %72 = vmatprep.subr.mxu0 0.0
    %73 = vmatpush1.msra.mxu0 %v59
    %74 = vmatprep.subr.mxu0 0.0
    %75 = vmatpush1.msra.mxu0 %v58
    %76 = vmatprep.subr.mxu0 0.0
    %77 = vmatpush1.msra.mxu0 %v57
    %78 = vmatprep.subr.mxu0 0.0
    %79 = vmatpush1.msra.mxu0 %v56
    %80 = vmatprep.subr.mxu0 0.0
    %81 = vmatpush1.msra.mxu0 %v55
    %82 = vmatprep.subr.mxu0 0.0
    %83 = vmatpush1.msra.mxu0 %v54
    %84 = vmatprep.subr.mxu0 0.0
    %85 = vmatpush1.msra.mxu0 %v53
    %86 = vmatprep.subr.mxu0 0.0
    %87 = vmatpush1.msra.mxu0 %v52
    %88 = vmatprep.subr.mxu0 0.0
    %89 = vmatpush1.msra.mxu0 %v51
    %90 = vmatprep.subr.mxu0 0.0
    %91 = vmatpush1.msra.mxu0 %v50
    %92 = vmatprep.subr.mxu0 0.0
    %93 = vmatpush1.msra.mxu0 %v49
    %94 = vmatprep.subr.mxu0 0.0
    %95 = vmatpush1.msra.mxu0 %v48
    %96 = vmatprep.subr.mxu0 0.0
    %97 = vmatpush2.msra.mxu0 0.0
    %98 = vmatprep.subr.mxu0 0.0
    %99 = vmatpush2.msra.mxu0 0.0
    %100 = vmatprep.subr.mxu0 0.0
    %101 = vmatpush2.msra.mxu0 0.0
    %102 = vmatprep.subr.mxu0 0.0
    %103 = vmatpush2.msra.mxu0 0.0
    %104 = vmatprep.subr.mxu0 0.0
    %105 = vmatpush2.msra.mxu0 0.0
    %106 = vmatprep.subr.mxu0 0.0
    %107 = vmatpush2.msra.mxu0 0.0
    %108 = vmatprep.subr.mxu0 0.0
    %109 = vmatpush2.msra.mxu0 0.0
    %110 = vmatprep.subr.mxu0 0.0
    %111 = vmatpush2.msra.mxu0 0.0
    %112 = vmatprep.subr.mxu0 0.0
    %113 = vmatpush2.msra.mxu0 0.0
    %114 = vmatprep.subr.mxu0 0.0
    %115 = vmatpush2.msra.mxu0 0.0
    %116 = vmatprep.subr.mxu0 0.0
    %117 = vmatpush2.msra.mxu0 0.0
    %118 = vmatprep.subr.mxu0 0.0
    %119 = vmatpush2.msra.mxu0 0.0
    %120 = vmatprep.subr.mxu0 0.0
    %121 = vmatpush2.msra.mxu0 0.0
    %122 = vmatprep.subr.mxu0 0.0
    %123 = vmatpush2.msra.mxu0 0.0
    %124 = vmatprep.subr.mxu0 0.0
    %125 = vmatpush2.msra.mxu0 0.0
    %126 = vmatprep.subr.mxu0 0.0
    %127 = vmatpush2.msra.mxu0 0.0
    %128 = vmatprep.mubr.f32.mxu0 0.0
    %129 = vmatmul.mubr.f32.gmra.mxu0 %v47
    %v130 = vpop.f32.mrf.mxu0
    %v131 = vadd.f32 0.0, %v130
    %v132 = vpop.f32.mrf.mxu0
    %133 = vdwg.mxu0
    %v134 = vadd.f32 %v46, %v131
    %135 = vst [vmem:[#allocation7] sm:$0xff] %v134
    // Predicated region
    $region26: #{tpu_custom_call.1} parent=1 // pred_check
      %p136 = pneg %p41
    $region27: #{tpu_custom_call.1} parent=1 // pred_check_branch
      %138 = sbr.rel (%p136) target = $region29
    $region28: #{tpu_custom_call.1} parent=1 // pred_region
      %v139 = vld [vmem:[#allocation7] sm:$0xff]
      %v140 = vld [vmem:[%s2] sm:$0x1]
      %v142 = vlaneseq
      %v143 = vshrl.u32 %v142, 7
      %v144 = vsub.s32 0, %v143
      %v145 = vrot.slane %v140, %v144
      %v147 = vadd.f32 %v139, %v145
      %v148 = vmax.f32 %v147, 0.0
      %149 = vst [vmem:[#allocation7] sm:$0xff] %v148
    $region29: #{tpu_custom_call.1} parent=1 // pred_fallthru
      _
    // Predicated region
    $region30: #{tpu_custom_call.1} parent=1 // pred_check
      _
    $region31: #{tpu_custom_call.1} parent=1 // pred_check_branch
      %151 = sbr.rel (0) target = $region33
    $region32: #{tpu_custom_call.1} parent=1 // pred_region
      %s153 = ssub.s32 128, 128
      %154 = vsyncadd [#allocation4], %s153
      %s156 = sshll.u32 [#allocation7], 4
      %s157 = int_to_ptr.vmem [resolvable:$true] %s156
      %159 = dma.vmem_to_hbm [thread:$0]  %s157, 128, %s3, [#allocation4]
    $region33: #{tpu_custom_call.1} parent=1 // pred_fallthru
      _
    // Predicated region
    $region34: #{tpu_custom_call.1} parent=1 // pred_check
      _
    $region35: #{tpu_custom_call.1} parent=1 // pred_check_branch
      %161 = sbr.rel (0) target = $region37
    $region36: #{tpu_custom_call.1} parent=1 // pred_region
      %162 = dma.done [#allocation4], 128
    $region37: #{tpu_custom_call.1} parent=1 // pred_fallthru
      _
    %163 = vsyncpa [#allocation3], 1
    %164 = vsyncpa [#allocation6], 1
    %165 = vsyncpa [#allocation4], 1

</llo_original>
